<compile_context>
chip_gen: v5e
topology: v5e:2x2
jax: 0.10.0
libtpu: 0.0.40
codegen_flags: <defaults>
</compile_context>

<pallas_src>
import functools

import jax
import jax.numpy as jnp
import numpy as np
from jax.experimental import pallas as pl
from jax.experimental.pallas import tpu as pltpu

PAD = (1, 1, 2, 0)   # (W_left, W_right, H_top, H_bottom) -- PyTorch F.pad order
KH = KW = 3
C_OUT = 5

# vreg guard: 9 taps * ceil(nb/8) * (hw/128) vregs; at hw=256 keep nb <= 16
# (36 tap vregs) so taps + bases + acc stay well inside the 64-vreg file.
_MAX_NB_PER_BLOCK = 16


def _circular_conv_kernel(x_ref, w_ref, b_ref, o_ref, *, h, w, ht, wl):
    # x_ref: (1, nb, h*w)         VMEM, lane-dense flattened spatial
    # w_ref: (C_OUT*KH*KW,)       SMEM, scalar reads
    # b_ref: (C_OUT,)             SMEM, scalar reads
    # o_ref: (1, nb, C_OUT*h*w)   VMEM, channels-on-lanes, lane-dense stores
    hw = h * w
    xf = x_ref[0]                                              # (nb, hw) f32

    # column index j of every flattened position p = i*w + j
    col = jax.lax.broadcasted_iota(jnp.int32, xf.shape, 1) % w

    def col_shifted(c):
        # returns array whose value at p = i*w + j is x[i, (j + c) mod w]
        if c == 0:
            return xf
        main = pltpu.roll(xf, (-c) % hw, axis=1)               # xf[(p + c) mod hw]
        if c > 0:
            wrap = pltpu.roll(xf, (w - c) % hw, axis=1)        # xf[p + c - w]
            return jnp.where(col >= w - c, wrap, main)
        wrap = pltpu.roll(xf, (-(c + w)) % hw, axis=1)         # xf[p + c + w]
        return jnp.where(col < -c, wrap, main)

    # 3 column-shifted bases, then 9 taps via whole-row lane rolls.  A shift
    # of r image rows is exactly a flat roll by r*w because the lane axis has
    # length h*w.  Taps are shared by all output channels.
    bases = [col_shifted(dj - wl) for dj in range(KW)]
    taps = []
    for di in range(KH):
        rshift = ((ht - di) * w) % hw
        taps.append([b if rshift == 0 else pltpu.roll(b, rshift, axis=1)
                     for b in bases])

    # 45 scalar-broadcast FMAs on the VPU (bias folded into the first one);
    # one lane-dense store per channel at a static, 128-aligned lane offset.
    for c in range(C_OUT):
        acc = w_ref[c * KH * KW] * taps[0][0] + b_ref[c]
        for di in range(KH):
            for dj in range(KW):
                if di == 0 and dj == 0:
                    continue
                acc = acc + w_ref[c * KH * KW + di * KW + dj] * taps[di][dj]
        o_ref[0, :, c * hw:(c + 1) * hw] = acc


def circular_pad_conv(x, weight, bias, *, batch_blocks=None):
    """x: (N, 1, H, W) f32 ; weight: (5, 1, 3, 3) f32 ; bias: (5,) f32.

    batch_blocks: number of grid steps the batch is split into.  Default
    (None) picks the fewest blocks with nb <= _MAX_NB_PER_BLOCK per block.
    Only shard across TensorCores (v7x) when nb per block stays >= 8 rows --
    splitting a tiny batch is pure per-step overhead, not a speedup.
    """
    n, c_in, h, w = x.shape
    assert c_in == 1
    wl, wr, ht, hb = PAD
    # fully-circular-conv form requires pad == kernel-1 per dim (true here)
    assert ht + hb == KH - 1 and wl + wr == KW - 1
    assert ht <= h and hb <= h and wl <= w and wr <= w

    if batch_blocks is None:
        batch_blocks = next(bb for bb in range(1, n + 1)
                            if n % bb == 0 and n // bb <= _MAX_NB_PER_BLOCK)
    assert n % batch_blocks == 0
    nb = n // batch_blocks
    # vreg-pressure guard: keep the 9 precomputed taps resident in vregs.
    assert nb <= _MAX_NB_PER_BLOCK, (
        f"nb={nb} per block would spill the 9 live taps to VMEM; "
        f"increase batch_blocks so nb <= {_MAX_NB_PER_BLOCK}")
    hw = h * w

    xf = x.astype(jnp.float32).reshape(batch_blocks, nb, hw)     # lane-dense input
    wflat = weight.astype(jnp.float32).reshape(C_OUT * KH * KW)  # 1-D SMEM weights
    b1d = bias.astype(jnp.float32)

    kernel = functools.partial(_circular_conv_kernel, h=h, w=w, ht=ht, wl=wl)

    out = pl.pallas_call(
        kernel,
        out_shape=jax.ShapeDtypeStruct((batch_blocks, nb, C_OUT * hw),
                                       jnp.float32),
        grid=(batch_blocks,),
        in_specs=[
            pl.BlockSpec((1, nb, hw), lambda g: (g, 0, 0)),
            pl.BlockSpec(memory_space=pltpu.MemorySpace.SMEM),
            pl.BlockSpec(memory_space=pltpu.MemorySpace.SMEM),
        ],
        out_specs=pl.BlockSpec((1, nb, C_OUT * hw), lambda g: (g, 0, 0)),
        compiler_params=pltpu.CompilerParams(dimension_semantics=("parallel",)),
    )(xf, wflat, b1d)

    # (G, nb, C_OUT*hw) -> (N, C_OUT, H, W): contiguous reshape only, no
    # transpose (channels already laid out on the lane axis by the kernel).
    return out.reshape(n, C_OUT, h, w)


def reference(x, weight, bias):
    """Pure-JAX reference: circular pad + NCHW conv."""
    wl, wr, ht, hb = PAD
    xp = jnp.pad(x, ((0, 0), (0, 0), (ht, hb), (wl, wr)), mode="wrap")
    y = jax.lax.conv_general_dilated(
        xp, weight, window_strides=(1, 1), padding="VALID",
        dimension_numbers=("NCHW", "OIHW", "NCHW"))
    return y + bias[None, :, None, None]


if __name__ == "__main__":
    key = jax.random.PRNGKey(0)
    kx, kw, kb = jax.random.split(key, 3)

    # Small deterministic inputs: N=2, C_in=1 (module requires it), H=W=16.
    x = jax.random.normal(kx, (2, 1, 16, 16), dtype=jnp.float32)

    # Deterministic Conv2d(1, 5, kernel_size=3) parameters (synthetic init,
    # matching PyTorch's uniform(-1/sqrt(fan_in), 1/sqrt(fan_in)) bound).
    fan_in = 1 * KH * KW
    bound = 1.0 / np.sqrt(fan_in)
    weight = jax.random.uniform(kw, (C_OUT, 1, KH, KW), jnp.float32, -bound, bound)
    bias = jax.random.uniform(kb, (C_OUT,), jnp.float32, -bound, bound)

    y_ref = jax.block_until_ready(reference(x, weight, bias))

    # Default path: whole batch in one grid step (overhead-minimal at N=2).
    y = jax.block_until_ready(circular_pad_conv(x, weight, bias))
    assert y.shape == (2, C_OUT, 16, 16), y.shape
    np.testing.assert_allclose(np.asarray(y), np.asarray(y_ref),
                               rtol=1e-5, atol=1e-5)

    print("KERNEL_OK")
</pallas_src>

<mosaic_0001>
module attributes {stable_mosaic.version = 11 : i64} {
  func.func @_circular_conv_kernel(%arg0: i32, %arg1: memref<1x2x256xf32, #tpu.memory_space<vmem>>, %arg2: memref<45xf32, #tpu.memory_space<smem>>, %arg3: memref<5xf32, #tpu.memory_space<smem>>, %arg4: memref<1x2x1280xf32, #tpu.memory_space<vmem>>) attributes {dimension_semantics = [#tpu.dimension_semantics<parallel>], iteration_bounds = array<i64: 1>, scalar_prefetch = 0 : i64, scratch_operands = 0 : i64, tpu.core_type = #tpu.core_type<tc>, window_params = [{transform_indices = @transform_0, window_bounds = array<i64: 1, 2, 256>}, {transform_indices = @transform_1, window_bounds = array<i64: 45>}, {transform_indices = @transform_2, window_bounds = array<i64: 5>}, {transform_indices = @transform_3, window_bounds = array<i64: 1, 2, 1280>}]} {
    %c0 = arith.constant 0 : index
    %c0_0 = arith.constant 0 : index
    %c0_1 = arith.constant 0 : index
    %0 = vector.load %arg1[%c0, %c0_0, %c0_1] : memref<1x2x256xf32, #tpu.memory_space<vmem>>, vector<1x2x256xf32>
    %1 = vector.shape_cast %0 : vector<1x2x256xf32> to vector<2x256xf32>
    %2 = tpu.iota {dimensions = array<i32: 1>} : vector<2x256xi32>
    %c16_i32 = arith.constant 16 : i32
    %c0_i32 = arith.constant 0 : i32
    %3 = arith.cmpi eq, %c16_i32, %c0_i32 : i32
    %c1_i32 = arith.constant 1 : i32
    %4 = arith.select %3, %c1_i32, %c16_i32 : i32
    %5 = vector.broadcast %4 : i32 to vector<2x256xi32>
    %6 = arith.remsi %2, %5 : vector<2x256xi32>
    %c0_i32_2 = arith.constant 0 : i32
    %7 = vector.broadcast %c0_i32_2 : i32 to vector<2x256xi32>
    %8 = arith.cmpi ne, %6, %7 : vector<2x256xi32>
    %c0_i32_3 = arith.constant 0 : i32
    %9 = vector.broadcast %c0_i32_3 : i32 to vector<2x256xi32>
    %10 = arith.cmpi slt, %6, %9 : vector<2x256xi32>
    %c0_i32_4 = arith.constant 0 : i32
    %11 = arith.cmpi slt, %4, %c0_i32_4 : i32
    %12 = vector.broadcast %11 : i1 to vector<2x256xi1>
    %13 = vector.broadcast %12 : vector<2x256xi1> to vector<2x256xi1>
    %14 = arith.xori %10, %13 : vector<2x256xi1>
    %15 = arith.andi %14, %8 : vector<2x256xi1>
    %16 = vector.broadcast %4 : i32 to vector<2x256xi32>
    %17 = arith.addi %6, %16 : vector<2x256xi32>
    %18 = arith.select %15, %17, %6 : vector<2x256xi1>, vector<2x256xi32>
    %c1_i32_5 = arith.constant 1 : i32
    %19 = tpu.dynamic_rotate %1 by %c1_i32_5 dim 1 : vector<2x256xf32>, i32 -> vector<2x256xf32>
    %c241_i32 = arith.constant 241 : i32
    %20 = tpu.dynamic_rotate %1 by %c241_i32 dim 1 : vector<2x256xf32>, i32 -> vector<2x256xf32>
    %c1_i32_6 = arith.constant 1 : i32
    %21 = vector.broadcast %c1_i32_6 : i32 to vector<2x256xi32>
    %22 = arith.cmpi slt, %18, %21 : vector<2x256xi32>
    %23 = arith.select %22, %20, %19 : vector<2x256xi1>, vector<2x256xf32>
    %c255_i32 = arith.constant 255 : i32
    %24 = tpu.dynamic_rotate %1 by %c255_i32 dim 1 : vector<2x256xf32>, i32 -> vector<2x256xf32>
    %c15_i32 = arith.constant 15 : i32
    %25 = tpu.dynamic_rotate %1 by %c15_i32 dim 1 : vector<2x256xf32>, i32 -> vector<2x256xf32>
    %c15_i32_7 = arith.constant 15 : i32
    %26 = vector.broadcast %c15_i32_7 : i32 to vector<2x256xi32>
    %27 = arith.cmpi sge, %18, %26 : vector<2x256xi32>
    %28 = arith.select %27, %25, %24 : vector<2x256xi1>, vector<2x256xf32>
    %c32_i32 = arith.constant 32 : i32
    %29 = tpu.dynamic_rotate %23 by %c32_i32 dim 1 : vector<2x256xf32>, i32 -> vector<2x256xf32>
    %c32_i32_8 = arith.constant 32 : i32
    %30 = tpu.dynamic_rotate %1 by %c32_i32_8 dim 1 : vector<2x256xf32>, i32 -> vector<2x256xf32>
    %c32_i32_9 = arith.constant 32 : i32
    %31 = tpu.dynamic_rotate %28 by %c32_i32_9 dim 1 : vector<2x256xf32>, i32 -> vector<2x256xf32>
    %c16_i32_10 = arith.constant 16 : i32
    %32 = tpu.dynamic_rotate %23 by %c16_i32_10 dim 1 : vector<2x256xf32>, i32 -> vector<2x256xf32>
    %c16_i32_11 = arith.constant 16 : i32
    %33 = tpu.dynamic_rotate %1 by %c16_i32_11 dim 1 : vector<2x256xf32>, i32 -> vector<2x256xf32>
    %c16_i32_12 = arith.constant 16 : i32
    %34 = tpu.dynamic_rotate %28 by %c16_i32_12 dim 1 : vector<2x256xf32>, i32 -> vector<2x256xf32>
    %c0_13 = arith.constant 0 : index
    %35 = memref.load %arg2[%c0_13] : memref<45xf32, #tpu.memory_space<smem>>
    %36 = vector.broadcast %35 : f32 to vector<2x256xf32>
    %37 = arith.mulf %36, %29 : vector<2x256xf32>
    %c0_14 = arith.constant 0 : index
    %38 = memref.load %arg3[%c0_14] : memref<5xf32, #tpu.memory_space<smem>>
    %39 = vector.broadcast %38 : f32 to vector<2x256xf32>
    %40 = arith.addf %37, %39 : vector<2x256xf32>
    %c1 = arith.constant 1 : index
    %41 = memref.load %arg2[%c1] : memref<45xf32, #tpu.memory_space<smem>>
    %42 = vector.broadcast %41 : f32 to vector<2x256xf32>
    %43 = arith.mulf %42, %30 : vector<2x256xf32>
    %44 = arith.addf %40, %43 : vector<2x256xf32>
    %c2 = arith.constant 2 : index
    %45 = memref.load %arg2[%c2] : memref<45xf32, #tpu.memory_space<smem>>
    %46 = vector.broadcast %45 : f32 to vector<2x256xf32>
    %47 = arith.mulf %46, %31 : vector<2x256xf32>
    %48 = arith.addf %44, %47 : vector<2x256xf32>
    %c3 = arith.constant 3 : index
    %49 = memref.load %arg2[%c3] : memref<45xf32, #tpu.memory_space<smem>>
    %50 = vector.broadcast %49 : f32 to vector<2x256xf32>
    %51 = arith.mulf %50, %32 : vector<2x256xf32>
    %52 = arith.addf %48, %51 : vector<2x256xf32>
    %c4 = arith.constant 4 : index
    %53 = memref.load %arg2[%c4] : memref<45xf32, #tpu.memory_space<smem>>
    %54 = vector.broadcast %53 : f32 to vector<2x256xf32>
    %55 = arith.mulf %54, %33 : vector<2x256xf32>
    %56 = arith.addf %52, %55 : vector<2x256xf32>
    %c5 = arith.constant 5 : index
    %57 = memref.load %arg2[%c5] : memref<45xf32, #tpu.memory_space<smem>>
    %58 = vector.broadcast %57 : f32 to vector<2x256xf32>
    %59 = arith.mulf %58, %34 : vector<2x256xf32>
    %60 = arith.addf %56, %59 : vector<2x256xf32>
    %c6 = arith.constant 6 : index
    %61 = memref.load %arg2[%c6] : memref<45xf32, #tpu.memory_space<smem>>
    %62 = vector.broadcast %61 : f32 to vector<2x256xf32>
    %63 = arith.mulf %62, %23 : vector<2x256xf32>
    %64 = arith.addf %60, %63 : vector<2x256xf32>
    %c7 = arith.constant 7 : index
    %65 = memref.load %arg2[%c7] : memref<45xf32, #tpu.memory_space<smem>>
    %66 = vector.broadcast %65 : f32 to vector<2x256xf32>
    %67 = arith.mulf %66, %1 : vector<2x256xf32>
    %68 = arith.addf %64, %67 : vector<2x256xf32>
    %c8 = arith.constant 8 : index
    %69 = memref.load %arg2[%c8] : memref<45xf32, #tpu.memory_space<smem>>
    %70 = vector.broadcast %69 : f32 to vector<2x256xf32>
    %71 = arith.mulf %70, %28 : vector<2x256xf32>
    %72 = arith.addf %68, %71 : vector<2x256xf32>
    %c0_15 = arith.constant 0 : index
    %c0_16 = arith.constant 0 : index
    %c0_17 = arith.constant 0 : index
    %73 = vector.load %arg4[%c0_15, %c0_16, %c0_17] : memref<1x2x1280xf32, #tpu.memory_space<vmem>>, vector<1x2x256xf32>
    %74 = vector.shape_cast %73 : vector<1x2x256xf32> to vector<2x256xf32>
    %75 = vector.shape_cast %72 : vector<2x256xf32> to vector<1x2x256xf32>
    tpu.vector_store %arg4[%c0_15, %c0_16, %c0_17], %75 {strides = array<i32>} : memref<1x2x1280xf32, #tpu.memory_space<vmem>>, vector<1x2x256xf32>,
    %c9 = arith.constant 9 : index
    %76 = memref.load %arg2[%c9] : memref<45xf32, #tpu.memory_space<smem>>
    %77 = vector.broadcast %76 : f32 to vector<2x256xf32>
    %78 = arith.mulf %77, %29 : vector<2x256xf32>
    %c1_18 = arith.constant 1 : index
    %79 = memref.load %arg3[%c1_18] : memref<5xf32, #tpu.memory_space<smem>>
    %80 = vector.broadcast %79 : f32 to vector<2x256xf32>
    %81 = arith.addf %78, %80 : vector<2x256xf32>
    %c10 = arith.constant 10 : index
    %82 = memref.load %arg2[%c10] : memref<45xf32, #tpu.memory_space<smem>>
    %83 = vector.broadcast %82 : f32 to vector<2x256xf32>
    %84 = arith.mulf %83, %30 : vector<2x256xf32>
    %85 = arith.addf %81, %84 : vector<2x256xf32>
    %c11 = arith.constant 11 : index
    %86 = memref.load %arg2[%c11] : memref<45xf32, #tpu.memory_space<smem>>
    %87 = vector.broadcast %86 : f32 to vector<2x256xf32>
    %88 = arith.mulf %87, %31 : vector<2x256xf32>
    %89 = arith.addf %85, %88 : vector<2x256xf32>
    %c12 = arith.constant 12 : index
    %90 = memref.load %arg2[%c12] : memref<45xf32, #tpu.memory_space<smem>>
    %91 = vector.broadcast %90 : f32 to vector<2x256xf32>
    %92 = arith.mulf %91, %32 : vector<2x256xf32>
    %93 = arith.addf %89, %92 : vector<2x256xf32>
    %c13 = arith.constant 13 : index
    %94 = memref.load %arg2[%c13] : memref<45xf32, #tpu.memory_space<smem>>
    %95 = vector.broadcast %94 : f32 to vector<2x256xf32>
    %96 = arith.mulf %95, %33 : vector<2x256xf32>
    %97 = arith.addf %93, %96 : vector<2x256xf32>
    %c14 = arith.constant 14 : index
    %98 = memref.load %arg2[%c14] : memref<45xf32, #tpu.memory_space<smem>>
    %99 = vector.broadcast %98 : f32 to vector<2x256xf32>
    %100 = arith.mulf %99, %34 : vector<2x256xf32>
    %101 = arith.addf %97, %100 : vector<2x256xf32>
    %c15 = arith.constant 15 : index
    %102 = memref.load %arg2[%c15] : memref<45xf32, #tpu.memory_space<smem>>
    %103 = vector.broadcast %102 : f32 to vector<2x256xf32>
    %104 = arith.mulf %103, %23 : vector<2x256xf32>
    %105 = arith.addf %101, %104 : vector<2x256xf32>
    %c16 = arith.constant 16 : index
    %106 = memref.load %arg2[%c16] : memref<45xf32, #tpu.memory_space<smem>>
    %107 = vector.broadcast %106 : f32 to vector<2x256xf32>
    %108 = arith.mulf %107, %1 : vector<2x256xf32>
    %109 = arith.addf %105, %108 : vector<2x256xf32>
    %c17 = arith.constant 17 : index
    %110 = memref.load %arg2[%c17] : memref<45xf32, #tpu.memory_space<smem>>
    %111 = vector.broadcast %110 : f32 to vector<2x256xf32>
    %112 = arith.mulf %111, %28 : vector<2x256xf32>
    %113 = arith.addf %109, %112 : vector<2x256xf32>
    %c0_19 = arith.constant 0 : index
    %c0_20 = arith.constant 0 : index
    %c256 = arith.constant 256 : index
    %114 = vector.load %arg4[%c0_19, %c0_20, %c256] : memref<1x2x1280xf32, #tpu.memory_space<vmem>>, vector<1x2x256xf32>
    %115 = vector.shape_cast %114 : vector<1x2x256xf32> to vector<2x256xf32>
    %116 = vector.shape_cast %113 : vector<2x256xf32> to vector<1x2x256xf32>
    tpu.vector_store %arg4[%c0_19, %c0_20, %c256], %116 {strides = array<i32>} : memref<1x2x1280xf32, #tpu.memory_space<vmem>>, vector<1x2x256xf32>,
    %c18 = arith.constant 18 : index
    %117 = memref.load %arg2[%c18] : memref<45xf32, #tpu.memory_space<smem>>
    %118 = vector.broadcast %117 : f32 to vector<2x256xf32>
    %119 = arith.mulf %118, %29 : vector<2x256xf32>
    %c2_21 = arith.constant 2 : index
    %120 = memref.load %arg3[%c2_21] : memref<5xf32, #tpu.memory_space<smem>>
    %121 = vector.broadcast %120 : f32 to vector<2x256xf32>
    %122 = arith.addf %119, %121 : vector<2x256xf32>
    %c19 = arith.constant 19 : index
    %123 = memref.load %arg2[%c19] : memref<45xf32, #tpu.memory_space<smem>>
    %124 = vector.broadcast %123 : f32 to vector<2x256xf32>
    %125 = arith.mulf %124, %30 : vector<2x256xf32>
    %126 = arith.addf %122, %125 : vector<2x256xf32>
    %c20 = arith.constant 20 : index
    %127 = memref.load %arg2[%c20] : memref<45xf32, #tpu.memory_space<smem>>
    %128 = vector.broadcast %127 : f32 to vector<2x256xf32>
    %129 = arith.mulf %128, %31 : vector<2x256xf32>
    %130 = arith.addf %126, %129 : vector<2x256xf32>
    %c21 = arith.constant 21 : index
    %131 = memref.load %arg2[%c21] : memref<45xf32, #tpu.memory_space<smem>>
    %132 = vector.broadcast %131 : f32 to vector<2x256xf32>
    %133 = arith.mulf %132, %32 : vector<2x256xf32>
    %134 = arith.addf %130, %133 : vector<2x256xf32>
    %c22 = arith.constant 22 : index
    %135 = memref.load %arg2[%c22] : memref<45xf32, #tpu.memory_space<smem>>
    %136 = vector.broadcast %135 : f32 to vector<2x256xf32>
    %137 = arith.mulf %136, %33 : vector<2x256xf32>
    %138 = arith.addf %134, %137 : vector<2x256xf32>
    %c23 = arith.constant 23 : index
    %139 = memref.load %arg2[%c23] : memref<45xf32, #tpu.memory_space<smem>>
    %140 = vector.broadcast %139 : f32 to vector<2x256xf32>
    %141 = arith.mulf %140, %34 : vector<2x256xf32>
    %142 = arith.addf %138, %141 : vector<2x256xf32>
    %c24 = arith.constant 24 : index
    %143 = memref.load %arg2[%c24] : memref<45xf32, #tpu.memory_space<smem>>
    %144 = vector.broadcast %143 : f32 to vector<2x256xf32>
    %145 = arith.mulf %144, %23 : vector<2x256xf32>
    %146 = arith.addf %142, %145 : vector<2x256xf32>
    %c25 = arith.constant 25 : index
    %147 = memref.load %arg2[%c25] : memref<45xf32, #tpu.memory_space<smem>>
    %148 = vector.broadcast %147 : f32 to vector<2x256xf32>
    %149 = arith.mulf %148, %1 : vector<2x256xf32>
    %150 = arith.addf %146, %149 : vector<2x256xf32>
    %c26 = arith.constant 26 : index
    %151 = memref.load %arg2[%c26] : memref<45xf32, #tpu.memory_space<smem>>
    %152 = vector.broadcast %151 : f32 to vector<2x256xf32>
    %153 = arith.mulf %152, %28 : vector<2x256xf32>
    %154 = arith.addf %150, %153 : vector<2x256xf32>
    %c0_22 = arith.constant 0 : index
    %c0_23 = arith.constant 0 : index
    %c512 = arith.constant 512 : index
    %155 = vector.load %arg4[%c0_22, %c0_23, %c512] : memref<1x2x1280xf32, #tpu.memory_space<vmem>>, vector<1x2x256xf32>
    %156 = vector.shape_cast %155 : vector<1x2x256xf32> to vector<2x256xf32>
    %157 = vector.shape_cast %154 : vector<2x256xf32> to vector<1x2x256xf32>
    tpu.vector_store %arg4[%c0_22, %c0_23, %c512], %157 {strides = array<i32>} : memref<1x2x1280xf32, #tpu.memory_space<vmem>>, vector<1x2x256xf32>,
    %c27 = arith.constant 27 : index
    %158 = memref.load %arg2[%c27] : memref<45xf32, #tpu.memory_space<smem>>
    %159 = vector.broadcast %158 : f32 to vector<2x256xf32>
    %160 = arith.mulf %159, %29 : vector<2x256xf32>
    %c3_24 = arith.constant 3 : index
    %161 = memref.load %arg3[%c3_24] : memref<5xf32, #tpu.memory_space<smem>>
    %162 = vector.broadcast %161 : f32 to vector<2x256xf32>
    %163 = arith.addf %160, %162 : vector<2x256xf32>
    %c28 = arith.constant 28 : index
    %164 = memref.load %arg2[%c28] : memref<45xf32, #tpu.memory_space<smem>>
    %165 = vector.broadcast %164 : f32 to vector<2x256xf32>
    %166 = arith.mulf %165, %30 : vector<2x256xf32>
    %167 = arith.addf %163, %166 : vector<2x256xf32>
    %c29 = arith.constant 29 : index
    %168 = memref.load %arg2[%c29] : memref<45xf32, #tpu.memory_space<smem>>
    %169 = vector.broadcast %168 : f32 to vector<2x256xf32>
    %170 = arith.mulf %169, %31 : vector<2x256xf32>
    %171 = arith.addf %167, %170 : vector<2x256xf32>
    %c30 = arith.constant 30 : index
    %172 = memref.load %arg2[%c30] : memref<45xf32, #tpu.memory_space<smem>>
    %173 = vector.broadcast %172 : f32 to vector<2x256xf32>
    %174 = arith.mulf %173, %32 : vector<2x256xf32>
    %175 = arith.addf %171, %174 : vector<2x256xf32>
    %c31 = arith.constant 31 : index
    %176 = memref.load %arg2[%c31] : memref<45xf32, #tpu.memory_space<smem>>
    %177 = vector.broadcast %176 : f32 to vector<2x256xf32>
    %178 = arith.mulf %177, %33 : vector<2x256xf32>
    %179 = arith.addf %175, %178 : vector<2x256xf32>
    %c32 = arith.constant 32 : index
    %180 = memref.load %arg2[%c32] : memref<45xf32, #tpu.memory_space<smem>>
    %181 = vector.broadcast %180 : f32 to vector<2x256xf32>
    %182 = arith.mulf %181, %34 : vector<2x256xf32>
    %183 = arith.addf %179, %182 : vector<2x256xf32>
    %c33 = arith.constant 33 : index
    %184 = memref.load %arg2[%c33] : memref<45xf32, #tpu.memory_space<smem>>
    %185 = vector.broadcast %184 : f32 to vector<2x256xf32>
    %186 = arith.mulf %185, %23 : vector<2x256xf32>
    %187 = arith.addf %183, %186 : vector<2x256xf32>
    %c34 = arith.constant 34 : index
    %188 = memref.load %arg2[%c34] : memref<45xf32, #tpu.memory_space<smem>>
    %189 = vector.broadcast %188 : f32 to vector<2x256xf32>
    %190 = arith.mulf %189, %1 : vector<2x256xf32>
    %191 = arith.addf %187, %190 : vector<2x256xf32>
    %c35 = arith.constant 35 : index
    %192 = memref.load %arg2[%c35] : memref<45xf32, #tpu.memory_space<smem>>
    %193 = vector.broadcast %192 : f32 to vector<2x256xf32>
    %194 = arith.mulf %193, %28 : vector<2x256xf32>
    %195 = arith.addf %191, %194 : vector<2x256xf32>
    %c0_25 = arith.constant 0 : index
    %c0_26 = arith.constant 0 : index
    %c768 = arith.constant 768 : index
    %196 = vector.load %arg4[%c0_25, %c0_26, %c768] : memref<1x2x1280xf32, #tpu.memory_space<vmem>>, vector<1x2x256xf32>
    %197 = vector.shape_cast %196 : vector<1x2x256xf32> to vector<2x256xf32>
    %198 = vector.shape_cast %195 : vector<2x256xf32> to vector<1x2x256xf32>
    tpu.vector_store %arg4[%c0_25, %c0_26, %c768], %198 {strides = array<i32>} : memref<1x2x1280xf32, #tpu.memory_space<vmem>>, vector<1x2x256xf32>,
    %c36 = arith.constant 36 : index
    %199 = memref.load %arg2[%c36] : memref<45xf32, #tpu.memory_space<smem>>
    %200 = vector.broadcast %199 : f32 to vector<2x256xf32>
    %201 = arith.mulf %200, %29 : vector<2x256xf32>
    %c4_27 = arith.constant 4 : index
    %202 = memref.load %arg3[%c4_27] : memref<5xf32, #tpu.memory_space<smem>>
    %203 = vector.broadcast %202 : f32 to vector<2x256xf32>
    %204 = arith.addf %201, %203 : vector<2x256xf32>
    %c37 = arith.constant 37 : index
    %205 = memref.load %arg2[%c37] : memref<45xf32, #tpu.memory_space<smem>>
    %206 = vector.broadcast %205 : f32 to vector<2x256xf32>
    %207 = arith.mulf %206, %30 : vector<2x256xf32>
    %208 = arith.addf %204, %207 : vector<2x256xf32>
    %c38 = arith.constant 38 : index
    %209 = memref.load %arg2[%c38] : memref<45xf32, #tpu.memory_space<smem>>
    %210 = vector.broadcast %209 : f32 to vector<2x256xf32>
    %211 = arith.mulf %210, %31 : vector<2x256xf32>
    %212 = arith.addf %208, %211 : vector<2x256xf32>
    %c39 = arith.constant 39 : index
    %213 = memref.load %arg2[%c39] : memref<45xf32, #tpu.memory_space<smem>>
    %214 = vector.broadcast %213 : f32 to vector<2x256xf32>
    %215 = arith.mulf %214, %32 : vector<2x256xf32>
    %216 = arith.addf %212, %215 : vector<2x256xf32>
    %c40 = arith.constant 40 : index
    %217 = memref.load %arg2[%c40] : memref<45xf32, #tpu.memory_space<smem>>
    %218 = vector.broadcast %217 : f32 to vector<2x256xf32>
    %219 = arith.mulf %218, %33 : vector<2x256xf32>
    %220 = arith.addf %216, %219 : vector<2x256xf32>
    %c41 = arith.constant 41 : index
    %221 = memref.load %arg2[%c41] : memref<45xf32, #tpu.memory_space<smem>>
    %222 = vector.broadcast %221 : f32 to vector<2x256xf32>
    %223 = arith.mulf %222, %34 : vector<2x256xf32>
    %224 = arith.addf %220, %223 : vector<2x256xf32>
    %c42 = arith.constant 42 : index
    %225 = memref.load %arg2[%c42] : memref<45xf32, #tpu.memory_space<smem>>
    %226 = vector.broadcast %225 : f32 to vector<2x256xf32>
    %227 = arith.mulf %226, %23 : vector<2x256xf32>
    %228 = arith.addf %224, %227 : vector<2x256xf32>
    %c43 = arith.constant 43 : index
    %229 = memref.load %arg2[%c43] : memref<45xf32, #tpu.memory_space<smem>>
    %230 = vector.broadcast %229 : f32 to vector<2x256xf32>
    %231 = arith.mulf %230, %1 : vector<2x256xf32>
    %232 = arith.addf %228, %231 : vector<2x256xf32>
    %c44 = arith.constant 44 : index
    %233 = memref.load %arg2[%c44] : memref<45xf32, #tpu.memory_space<smem>>
    %234 = vector.broadcast %233 : f32 to vector<2x256xf32>
    %235 = arith.mulf %234, %28 : vector<2x256xf32>
    %236 = arith.addf %232, %235 : vector<2x256xf32>
    %c0_28 = arith.constant 0 : index
    %c0_29 = arith.constant 0 : index
    %c1024 = arith.constant 1024 : index
    %237 = vector.load %arg4[%c0_28, %c0_29, %c1024] : memref<1x2x1280xf32, #tpu.memory_space<vmem>>, vector<1x2x256xf32>
    %238 = vector.shape_cast %237 : vector<1x2x256xf32> to vector<2x256xf32>
    %239 = vector.shape_cast %236 : vector<2x256xf32> to vector<1x2x256xf32>
    tpu.vector_store %arg4[%c0_28, %c0_29, %c1024], %239 {strides = array<i32>} : memref<1x2x1280xf32, #tpu.memory_space<vmem>>, vector<1x2x256xf32>,
    return
  }
  func.func @transform_0(%arg0: i32) -> (i32, i32, i32) {
    %c0_i32 = arith.constant 0 : i32
    %c0_i32_0 = arith.constant 0 : i32
    %c0_i32_1 = arith.constant 0 : i32
    return %arg0, %c0_i32, %c0_i32_0 : i32, i32, i32
  }
  func.func @transform_1(%arg0: i32) -> i32 {
    %c0_i32 = arith.constant 0 : i32
    %c0_i32_0 = arith.constant 0 : i32
    return %c0_i32 : i32
  }
  func.func @transform_2(%arg0: i32) -> i32 {
    %c0_i32 = arith.constant 0 : i32
    %c0_i32_0 = arith.constant 0 : i32
    return %c0_i32 : i32
  }
  func.func @transform_3(%arg0: i32) -> (i32, i32, i32) {
    %c0_i32 = arith.constant 0 : i32
    %c0_i32_0 = arith.constant 0 : i32
    %c0_i32_1 = arith.constant 0 : i32
    return %arg0, %c0_i32, %c0_i32_0 : i32, i32, i32
  }
}

</mosaic_0001>

<llo_original>
// kernel: tpu_custom_call.1
$region0: #{tpu_custom_call.1}
  #allocation0 [shape = 'u32[]', space=smem, size = 0x4, offset = 0x4, fixed_abs, tag = 'smem constant byte address 0x4 - core index']
  #allocation1 [shape = 'u32[72,128]{1,0:T(1,128)}', space=vmem, size = 0x9000, scoped, tag = 'internal scratch']
  %s0 = inlined_call_operand.hbm [shape: f32[1,2,256], index: 0, kind: input, shape index: {}]
  %s1 = inlined_call_operand.hbm [shape: f32[45], index: 1, kind: input, shape index: {}]
  %s2 = inlined_call_operand.vmem [shape: f32[5], index: 2, kind: input, shape index: {}]
  %s3 = inlined_call_operand.hbm [shape: f32[1,2,1280], index: 3, kind: output, shape index: {}]
  %s4 = sld [smem:[#allocation0]]
  $region34: #{tpu_custom_call.1} parent=0
    _
  %s6 = ssub.s32 1, %s4
  %s7 = scalar_select 0, %s6, %s4
  $region1: #{tpu_custom_call.1} parent=0
    #allocation2 [shape = 'u8[2048]{0}', space=vmem, size = 0x800, scoped, tag = 'input window, operand 0, single buffered']
    #allocation3 [shape = 's32[1]{0}', space=sflag, size = 0x4, scoped, tag = 'scoped memory for tpu_custom_call.1']
    #allocation4 [shape = 's32[1]{0}', space=sflag, size = 0x4, scoped, tag = 'scoped memory for tpu_custom_call.1']
    #allocation5 [shape = 's32[1]{0}', space=sflag, size = 0x4, scoped, tag = 'scoped memory for tpu_custom_call.1']
    #allocation6 [shape = 's32[1]{0}', space=sflag, size = 0x4, scoped, tag = 'scoped memory for tpu_custom_call.1']
    #allocation7 [shape = 'u8[512]{0}', space=smem, size = 0x200, scoped, tag = 'input window, operand 1, single buffered']
    #allocation8 [shape = 'u8[512]{0}', space=smem, size = 0x200, scoped, tag = 'input window, operand 2, single buffered']
    #allocation9 [shape = 'u8[10240]{0}', space=vmem, size = 0x2800, scoped, tag = 'output window, operand 0, single buffered']
    %8 = vsyncpa [#allocation3], 0
    %9 = vsyncpa [#allocation5], 0
    %10 = vsyncpa [#allocation6], 0
    %11 = vsyncpa [#allocation4], 0
    // Predicated region
    $region2: #{tpu_custom_call.1} parent=1 // pred_check
      _
    $region3: #{tpu_custom_call.1} parent=1 // pred_check_branch
      %13 = sbr.rel (0) target = $region5
    $region4: #{tpu_custom_call.1} parent=1 // pred_region
      %15 = vsyncadd [#allocation3], 0
      %s17 = sshll.u32 %s0, 4
      %s18 = int_to_ptr.hbm [resolvable:$true] %s17
      %s19 = sshll.u32 [#allocation2], 4
      %s20 = int_to_ptr.vmem [resolvable:$true] %s19
      %22 = dma.hbm_to_vmem [thread:$0]  %s18, 64, %s20, [#allocation3]
    $region5: #{tpu_custom_call.1} parent=1 // pred_fallthru
      _
    // Predicated region
    $region6: #{tpu_custom_call.1} parent=1 // pred_check
      _
    $region7: #{tpu_custom_call.1} parent=1 // pred_check_branch
      %24 = sbr.rel (0) target = $region9
    $region8: #{tpu_custom_call.1} parent=1 // pred_region
      %26 = vsyncadd [#allocation5], 0
      %s28 = sshll.u32 %s1, 4
      %s29 = int_to_ptr.hbm [resolvable:$true] %s28
      %31 = dma.hbm_to_smem %s29, 16, [#allocation7], [#allocation5]
    $region9: #{tpu_custom_call.1} parent=1 // pred_fallthru
      _
    // Predicated region
    $region10: #{tpu_custom_call.1} parent=1 // pred_check
      _
    $region11: #{tpu_custom_call.1} parent=1 // pred_check_branch
      %33 = sbr.rel (0) target = $region13
    $region12: #{tpu_custom_call.1} parent=1 // pred_region
      %35 = vsyncadd [#allocation6], 0
      %s37 = sshll.u32 %s2, 4
      %s38 = int_to_ptr.vmem [resolvable:$true] %s37
      %40 = dma.vmem_to_smem %s38, 16, [#allocation8], [#allocation6]
    $region13: #{tpu_custom_call.1} parent=1 // pred_fallthru
      _
    // Predicated region
    $region14: #{tpu_custom_call.1} parent=1 // pred_check
      _
    $region15: #{tpu_custom_call.1} parent=1 // pred_check_branch
      %42 = sbr.rel (0) target = $region17
    $region16: #{tpu_custom_call.1} parent=1 // pred_region
      %44 = dma.done [#allocation3], 64
    $region17: #{tpu_custom_call.1} parent=1 // pred_fallthru
      _
    // Predicated region
    $region18: #{tpu_custom_call.1} parent=1 // pred_check
      _
    $region19: #{tpu_custom_call.1} parent=1 // pred_check_branch
      %46 = sbr.rel (0) target = $region21
    $region20: #{tpu_custom_call.1} parent=1 // pred_region
      %48 = dma.done [#allocation5], 16
    $region21: #{tpu_custom_call.1} parent=1 // pred_fallthru
      _
    // Predicated region
    $region22: #{tpu_custom_call.1} parent=1 // pred_check
      _
    $region23: #{tpu_custom_call.1} parent=1 // pred_check_branch
      %50 = sbr.rel (0) target = $region25
    $region24: #{tpu_custom_call.1} parent=1 // pred_region
      %52 = dma.done [#allocation6], 16
    $region25: #{tpu_custom_call.1} parent=1 // pred_fallthru
      _
    %53 = sfence
    %v54 = vld [vmem:[#allocation2] sm:$0xf]
    %v55 = vlaneseq
    %v56 = vand.u32 %v55, 127
    %v57 = vadd.s32 %v56, 128
    %vm58 = vcmp.lt.s32.totalorder %v56, 0
    %v59 = vsub.s32 0, %v56
    %v60 = vsel %vm58, %v59, %v56
    %v61 = vshrl.u32 %v60, 4
    %v62 = vand.u32 %v60, 15
    %v63 = vsub.s32 0, %v62
    %v64 = vsel %vm58, %v63, %v62
    %vm65 = vcmp.lt.s32.totalorder %v57, 0
    %v66 = vsub.s32 0, %v57
    %v67 = vsel %vm65, %v66, %v57
    %v68 = vshrl.u32 %v67, 4
    %v69 = vand.u32 %v67, 15
    %v70 = vsub.s32 0, %v69
    %v71 = vsel %vm65, %v70, %v69
    %vm72 = vcmp.ne.s32.totalorder %v64, 0
    %vm73 = vcmp.ne.s32.totalorder %v71, 0
    %vm74 = vcmp.lt.s32.totalorder %v64, 0
    %vm75 = vcmp.lt.s32.totalorder %v71, 0
    %vm76 = vmand %vm74, %vm72
    %vm77 = vmand %vm75, %vm73
    %v78 = vadd.s32 %v64, 16
    %v79 = vadd.s32 %v71, 16
    %v80 = vsel %vm76, %v78, %v64
    %v81 = vsel %vm77, %v79, %v71
    %83 = vst [vmem:[#allocation1] ss:$4 sm:$0xff] %v54
    %v84 = vld.sshfl [vmem:[#allocation1] sm:$0xff pattern:$0x73625140]
    %v85 = vld.sshfl [vmem:[#allocation1 + $0x8] sm:$0xff pattern:$0x73625140]
    %88 = vrot.lane.b32.xlu0 %v84, 1
    %v89 = vpop.permute.xlu0 %88
    %90 = vrot.lane.b32.xlu0 %v85, 1
    %v91 = vpop.permute.xlu0 %90
    %vm92 = vcmp.lt.s32.totalorder %v56, 1
    %v93 = vsel %vm92, %v89, %v91
    %v94 = vsel %vm92, %v91, %v89
    %95 = vst [vmem:[#allocation1] ss:$4 sm:$0xff] %v54
    %v96 = vld.sshfl [vmem:[#allocation1] sm:$0xff pattern:$0x73625140]
    %v97 = vld.sshfl [vmem:[#allocation1 + $0x8] sm:$0xff pattern:$0x73625140]
    %100 = vrot.lane.b32.xlu0 %v96, 113
    %v101 = vpop.permute.xlu0 %100
    %102 = vrot.lane.b32.xlu0 %v97, 113
    %v103 = vpop.permute.xlu0 %102
    %vm104 = vcmp.lt.s32.totalorder %v56, 113
    %v105 = vsel %vm104, %v101, %v103
    %v106 = vsel %vm104, %v103, %v101
    %vm107 = vcmp.lt.s32.totalorder %v80, 1
    %vm108 = vcmp.lt.s32.totalorder %v81, 1
    %v109 = vsel %vm107, %v105, %v94
    %v110 = vsel %vm108, %v106, %v93
    %111 = vst [vmem:[#allocation1] ss:$4 sm:$0xff] %v54
    %v112 = vld.sshfl [vmem:[#allocation1] sm:$0xff pattern:$0x73625140]
    %v113 = vld.sshfl [vmem:[#allocation1 + $0x8] sm:$0xff pattern:$0x73625140]
    %116 = vrot.lane.b32.xlu0 %v112, 127
    %v117 = vpop.permute.xlu0 %116
    %118 = vrot.lane.b32.xlu0 %v113, 127
    %v119 = vpop.permute.xlu0 %118
    %vm120 = vcmp.lt.s32.totalorder %v56, 127
    %v121 = vsel %vm120, %v117, %v119
    %v122 = vsel %vm120, %v119, %v117
    %123 = vst [vmem:[#allocation1] ss:$4 sm:$0xff] %v54
    %v124 = vld.sshfl [vmem:[#allocation1] sm:$0xff pattern:$0x73625140]
    %v125 = vld.sshfl [vmem:[#allocation1 + $0x8] sm:$0xff pattern:$0x73625140]
    %128 = vrot.lane.b32.xlu0 %v124, 15
    %v129 = vpop.permute.xlu0 %128
    %130 = vrot.lane.b32.xlu0 %v125, 15
    %v131 = vpop.permute.xlu0 %130
    %vm132 = vcmp.lt.s32.totalorder %v56, 15
    %v133 = vsel %vm132, %v129, %v131
    %v134 = vsel %vm132, %v131, %v129
    %vm135 = vcmp.ge.s32.totalorder %v80, 15
    %vm136 = vcmp.ge.s32.totalorder %v81, 15
    %v137 = vsel %vm135, %v134, %v121
    %v138 = vsel %vm136, %v133, %v122
    %139 = vrot.lane.b32.xlu0 %v109, 32
    %v140 = vpop.permute.xlu0 %139
    %141 = vrot.lane.b32.xlu0 %v110, 32
    %v142 = vpop.permute.xlu0 %141
    %vm143 = vcmp.lt.s32.totalorder %v56, 32
    %v144 = vsel %vm143, %v140, %v142
    %v145 = vsel %vm143, %v142, %v140
    %146 = vst [vmem:[#allocation1] ss:$4 sm:$0xff] %v54
    %v147 = vld.sshfl [vmem:[#allocation1] sm:$0xff pattern:$0x73625140]
    %v148 = vld.sshfl [vmem:[#allocation1 + $0x8] sm:$0xff pattern:$0x73625140]
    %151 = vrot.lane.b32.xlu0 %v147, 32
    %v152 = vpop.permute.xlu0 %151
    %153 = vrot.lane.b32.xlu0 %v148, 32
    %v154 = vpop.permute.xlu0 %153
    %v155 = vsel %vm143, %v152, %v154
    %v156 = vsel %vm143, %v154, %v152
    %157 = vrot.lane.b32.xlu0 %v137, 32
    %v158 = vpop.permute.xlu0 %157
    %159 = vrot.lane.b32.xlu0 %v138, 32
    %v160 = vpop.permute.xlu0 %159
    %v161 = vsel %vm143, %v158, %v160
    %v162 = vsel %vm143, %v160, %v158
    %163 = vrot.lane.b32.xlu0 %v109, 16
    %v164 = vpop.permute.xlu0 %163
    %165 = vrot.lane.b32.xlu0 %v110, 16
    %v166 = vpop.permute.xlu0 %165
    %vm167 = vcmp.lt.s32.totalorder %v56, 16
    %v168 = vsel %vm167, %v164, %v166
    %v169 = vsel %vm167, %v166, %v164
    %170 = vst [vmem:[#allocation1] ss:$4 sm:$0xff] %v54
    %v171 = vld.sshfl [vmem:[#allocation1] sm:$0xff pattern:$0x73625140]
    %v172 = vld.sshfl [vmem:[#allocation1 + $0x8] sm:$0xff pattern:$0x73625140]
    %175 = vrot.lane.b32.xlu0 %v171, 16
    %v176 = vpop.permute.xlu0 %175
    %177 = vrot.lane.b32.xlu0 %v172, 16
    %v178 = vpop.permute.xlu0 %177
    %v179 = vsel %vm167, %v176, %v178
    %v180 = vsel %vm167, %v178, %v176
    %181 = vrot.lane.b32.xlu0 %v137, 16
    %v182 = vpop.permute.xlu0 %181
    %183 = vrot.lane.b32.xlu0 %v138, 16
    %v184 = vpop.permute.xlu0 %183
    %v185 = vsel %vm167, %v182, %v184
    %v186 = vsel %vm167, %v184, %v182
    %s187 = sld [smem:[#allocation7]]
    %v188 = vstv %s187
    %v189 = vmul.f32 %v188, %v145
    %v190 = vmul.f32 %v188, %v144
    %s191 = sld [smem:[#allocation8]]
    %v192 = vstv %s191
    %v193 = vadd.f32 %v189, %v192
    %v194 = vadd.f32 %v190, %v192
    %s195 = sld [smem:[#allocation7 + $0x1]]
    %v196 = vstv %s195
    %v197 = vmul.f32 %v196, %v156
    %v198 = vmul.f32 %v196, %v155
    %v199 = vadd.f32 %v193, %v197
    %v200 = vadd.f32 %v194, %v198
    %s201 = sld [smem:[#allocation7 + $0x2]]
    %v202 = vstv %s201
    %v203 = vmul.f32 %v202, %v162
    %v204 = vmul.f32 %v202, %v161
    %v205 = vadd.f32 %v199, %v203
    %v206 = vadd.f32 %v200, %v204
    %s207 = sld [smem:[#allocation7 + $0x3]]
    %v208 = vstv %s207
    %v209 = vmul.f32 %v208, %v169
    %v210 = vmul.f32 %v208, %v168
    %v211 = vadd.f32 %v205, %v209
    %v212 = vadd.f32 %v206, %v210
    %s213 = sld [smem:[#allocation7 + $0x4]]
    %v214 = vstv %s213
    %v215 = vmul.f32 %v214, %v180
    %v216 = vmul.f32 %v214, %v179
    %v217 = vadd.f32 %v211, %v215
    %v218 = vadd.f32 %v212, %v216
    %s219 = sld [smem:[#allocation7 + $0x5]]
    %v220 = vstv %s219
    %v221 = vmul.f32 %v220, %v186
    %v222 = vmul.f32 %v220, %v185
    %v223 = vadd.f32 %v217, %v221
    %v224 = vadd.f32 %v218, %v222
    %s225 = sld [smem:[#allocation7 + $0x6]]
    %v226 = vstv %s225
    %v227 = vmul.f32 %v226, %v109
    %v228 = vmul.f32 %v226, %v110
    %v229 = vadd.f32 %v223, %v227
    %v230 = vadd.f32 %v224, %v228
    %s231 = sld [smem:[#allocation7 + $0x7]]
    %v232 = vstv %s231
    %v233 = vmul.f32 %v232, %v54
    %235 = vst [vmem:[#allocation1] ss:$4 sm:$0xff] %v233
    %v236 = vld.sshfl [vmem:[#allocation1] sm:$0xff pattern:$0x73625140]
    %v237 = vld.sshfl [vmem:[#allocation1 + $0x8] sm:$0xff pattern:$0x73625140]
    %v240 = vadd.f32 %v229, %v236
    %v241 = vadd.f32 %v230, %v237
    %s242 = sld [smem:[#allocation7 + $0x8]]
    %v243 = vstv %s242
    %v244 = vmul.f32 %v243, %v137
    %v245 = vmul.f32 %v243, %v138
    %v246 = vadd.f32 %v240, %v244
    %v247 = vadd.f32 %v241, %v245
    %v250 = vrot.slane %v247, 6
    %vm251 = vcmask 1041408
    %v252 = vsel %vm251, %v246, %v250
    %254 = vst [vmem:[#allocation9] sm:$0xf] %v252
    %s255 = sld [smem:[#allocation7 + $0x9]]
    %v256 = vstv %s255
    %v257 = vmul.f32 %v256, %v145
    %v258 = vmul.f32 %v256, %v144
    %s259 = sld [smem:[#allocation8 + $0x1]]
    %v260 = vstv %s259
    %v261 = vadd.f32 %v257, %v260
    %v262 = vadd.f32 %v258, %v260
    %s263 = sld [smem:[#allocation7 + $0xa]]
    %v264 = vstv %s263
    %v265 = vmul.f32 %v264, %v156
    %v266 = vmul.f32 %v264, %v155
    %v267 = vadd.f32 %v261, %v265
    %v268 = vadd.f32 %v262, %v266
    %s269 = sld [smem:[#allocation7 + $0xb]]
    %v270 = vstv %s269
    %v271 = vmul.f32 %v270, %v162
    %v272 = vmul.f32 %v270, %v161
    %v273 = vadd.f32 %v267, %v271
    %v274 = vadd.f32 %v268, %v272
    %s275 = sld [smem:[#allocation7 + $0xc]]
    %v276 = vstv %s275
    %v277 = vmul.f32 %v276, %v169
    %v278 = vmul.f32 %v276, %v168
    %v279 = vadd.f32 %v273, %v277
    %v280 = vadd.f32 %v274, %v278
    %s281 = sld [smem:[#allocation7 + $0xd]]
    %v282 = vstv %s281
    %v283 = vmul.f32 %v282, %v180
    %v284 = vmul.f32 %v282, %v179
    %v285 = vadd.f32 %v279, %v283
    %v286 = vadd.f32 %v280, %v284
    %s287 = sld [smem:[#allocation7 + $0xe]]
    %v288 = vstv %s287
    %v289 = vmul.f32 %v288, %v186
    %v290 = vmul.f32 %v288, %v185
    %v291 = vadd.f32 %v285, %v289
    %v292 = vadd.f32 %v286, %v290
    %s293 = sld [smem:[#allocation7 + $0xf]]
    %v294 = vstv %s293
    %v295 = vmul.f32 %v294, %v109
    %v296 = vmul.f32 %v294, %v110
    %v297 = vadd.f32 %v291, %v295
    %v298 = vadd.f32 %v292, %v296
    %s299 = sld [smem:[#allocation7 + $0x10]]
    %v300 = vstv %s299
    %v301 = vmul.f32 %v300, %v54
    %303 = vst [vmem:[#allocation1] ss:$4 sm:$0xff] %v301
    %v304 = vld.sshfl [vmem:[#allocation1] sm:$0xff pattern:$0x73625140]
    %v305 = vld.sshfl [vmem:[#allocation1 + $0x8] sm:$0xff pattern:$0x73625140]
    %v308 = vadd.f32 %v297, %v304
    %v309 = vadd.f32 %v298, %v305
    %s310 = sld [smem:[#allocation7 + $0x11]]
    %v311 = vstv %s310
    %v312 = vmul.f32 %v311, %v137
    %v313 = vmul.f32 %v311, %v138
    %v314 = vadd.f32 %v308, %v312
    %v315 = vadd.f32 %v309, %v313
    %v318 = vrot.slane %v315, 6
    %v319 = vsel %vm251, %v314, %v318
    %321 = vst [vmem:[#allocation9 + $0x4] sm:$0xf] %v319
    %s322 = sld [smem:[#allocation7 + $0x12]]
    %v323 = vstv %s322
    %v324 = vmul.f32 %v323, %v145
    %v325 = vmul.f32 %v323, %v144
    %s326 = sld [smem:[#allocation8 + $0x2]]
    %v327 = vstv %s326
    %v328 = vadd.f32 %v324, %v327
    %v329 = vadd.f32 %v325, %v327
    %s330 = sld [smem:[#allocation7 + $0x13]]
    %v331 = vstv %s330
    %v332 = vmul.f32 %v331, %v156
    %v333 = vmul.f32 %v331, %v155
    %v334 = vadd.f32 %v328, %v332
    %v335 = vadd.f32 %v329, %v333
    %s336 = sld [smem:[#allocation7 + $0x14]]
    %v337 = vstv %s336
    %v338 = vmul.f32 %v337, %v162
    %v339 = vmul.f32 %v337, %v161
    %v340 = vadd.f32 %v334, %v338
    %v341 = vadd.f32 %v335, %v339
    %s342 = sld [smem:[#allocation7 + $0x15]]
    %v343 = vstv %s342
    %v344 = vmul.f32 %v343, %v169
    %v345 = vmul.f32 %v343, %v168
    %v346 = vadd.f32 %v340, %v344
    %v347 = vadd.f32 %v341, %v345
    %s348 = sld [smem:[#allocation7 + $0x16]]
    %v349 = vstv %s348
    %v350 = vmul.f32 %v349, %v180
    %v351 = vmul.f32 %v349, %v179
    %v352 = vadd.f32 %v346, %v350
    %v353 = vadd.f32 %v347, %v351
    %s354 = sld [smem:[#allocation7 + $0x17]]
    %v355 = vstv %s354
    %v356 = vmul.f32 %v355, %v186
    %v357 = vmul.f32 %v355, %v185
    %v358 = vadd.f32 %v352, %v356
    %v359 = vadd.f32 %v353, %v357
    %s360 = sld [smem:[#allocation7 + $0x18]]
    %v361 = vstv %s360
    %v362 = vmul.f32 %v361, %v109
    %v363 = vmul.f32 %v361, %v110
    %v364 = vadd.f32 %v358, %v362
    %v365 = vadd.f32 %v359, %v363
    %s366 = sld [smem:[#allocation7 + $0x19]]
    %v367 = vstv %s366
    %v368 = vmul.f32 %v367, %v54
    %370 = vst [vmem:[#allocation1] ss:$4 sm:$0xff] %v368
    %v371 = vld.sshfl [vmem:[#allocation1] sm:$0xff pattern:$0x73625140]
    %v372 = vld.sshfl [vmem:[#allocation1 + $0x8] sm:$0xff pattern:$0x73625140]
    %v375 = vadd.f32 %v364, %v371
    %v376 = vadd.f32 %v365, %v372
    %s377 = sld [smem:[#allocation7 + $0x1a]]
    %v378 = vstv %s377
    %v379 = vmul.f32 %v378, %v137
    %v380 = vmul.f32 %v378, %v138
    %v381 = vadd.f32 %v375, %v379
    %v382 = vadd.f32 %v376, %v380
    %v385 = vrot.slane %v382, 6
    %v386 = vsel %vm251, %v381, %v385
    %388 = vst [vmem:[#allocation9 + $0x8] sm:$0xf] %v386
    %s389 = sld [smem:[#allocation7 + $0x1b]]
    %v390 = vstv %s389
    %v391 = vmul.f32 %v390, %v145
    %v392 = vmul.f32 %v390, %v144
    %s393 = sld [smem:[#allocation8 + $0x3]]
    %v394 = vstv %s393
    %v395 = vadd.f32 %v391, %v394
    %v396 = vadd.f32 %v392, %v394
    %s397 = sld [smem:[#allocation7 + $0x1c]]
    %v398 = vstv %s397
    %v399 = vmul.f32 %v398, %v156
    %v400 = vmul.f32 %v398, %v155
    %v401 = vadd.f32 %v395, %v399
    %v402 = vadd.f32 %v396, %v400
    %s403 = sld [smem:[#allocation7 + $0x1d]]
    %v404 = vstv %s403
    %v405 = vmul.f32 %v404, %v162
    %v406 = vmul.f32 %v404, %v161
    %v407 = vadd.f32 %v401, %v405
    %v408 = vadd.f32 %v402, %v406
    %s409 = sld [smem:[#allocation7 + $0x1e]]
    %v410 = vstv %s409
    %v411 = vmul.f32 %v410, %v169
    %v412 = vmul.f32 %v410, %v168
    %v413 = vadd.f32 %v407, %v411
    %v414 = vadd.f32 %v408, %v412
    %s415 = sld [smem:[#allocation7 + $0x1f]]
    %v416 = vstv %s415
    %v417 = vmul.f32 %v416, %v180
    %v418 = vmul.f32 %v416, %v179
    %v419 = vadd.f32 %v413, %v417
    %v420 = vadd.f32 %v414, %v418
    %s421 = sld [smem:[#allocation7 + $0x20]]
    %v422 = vstv %s421
    %v423 = vmul.f32 %v422, %v186
    %v424 = vmul.f32 %v422, %v185
    %v425 = vadd.f32 %v419, %v423
    %v426 = vadd.f32 %v420, %v424
    %s427 = sld [smem:[#allocation7 + $0x21]]
    %v428 = vstv %s427
    %v429 = vmul.f32 %v428, %v109
    %v430 = vmul.f32 %v428, %v110
    %v431 = vadd.f32 %v425, %v429
    %v432 = vadd.f32 %v426, %v430
    %s433 = sld [smem:[#allocation7 + $0x22]]
    %v434 = vstv %s433
    %v435 = vmul.f32 %v434, %v54
    %437 = vst [vmem:[#allocation1] ss:$4 sm:$0xff] %v435
    %v438 = vld.sshfl [vmem:[#allocation1] sm:$0xff pattern:$0x73625140]
    %v439 = vld.sshfl [vmem:[#allocation1 + $0x8] sm:$0xff pattern:$0x73625140]
    %v442 = vadd.f32 %v431, %v438
    %v443 = vadd.f32 %v432, %v439
    %s444 = sld [smem:[#allocation7 + $0x23]]
    %v445 = vstv %s444
    %v446 = vmul.f32 %v445, %v137
    %v447 = vmul.f32 %v445, %v138
    %v448 = vadd.f32 %v442, %v446
    %v449 = vadd.f32 %v443, %v447
    %v452 = vrot.slane %v449, 6
    %v453 = vsel %vm251, %v448, %v452
    %455 = vst [vmem:[#allocation9 + $0xc] sm:$0xf] %v453
    %s456 = sld [smem:[#allocation7 + $0x24]]
    %v457 = vstv %s456
    %v458 = vmul.f32 %v457, %v145
    %v459 = vmul.f32 %v457, %v144
    %s460 = sld [smem:[#allocation8 + $0x4]]
    %v461 = vstv %s460
    %v462 = vadd.f32 %v458, %v461
    %v463 = vadd.f32 %v459, %v461
    %s464 = sld [smem:[#allocation7 + $0x25]]
    %v465 = vstv %s464
    %v466 = vmul.f32 %v465, %v156
    %v467 = vmul.f32 %v465, %v155
    %v468 = vadd.f32 %v462, %v466
    %v469 = vadd.f32 %v463, %v467
    %s470 = sld [smem:[#allocation7 + $0x26]]
    %v471 = vstv %s470
    %v472 = vmul.f32 %v471, %v162
    %v473 = vmul.f32 %v471, %v161
    %v474 = vadd.f32 %v468, %v472
    %v475 = vadd.f32 %v469, %v473
    %s476 = sld [smem:[#allocation7 + $0x27]]
    %v477 = vstv %s476
    %v478 = vmul.f32 %v477, %v169
    %v479 = vmul.f32 %v477, %v168
    %v480 = vadd.f32 %v474, %v478
    %v481 = vadd.f32 %v475, %v479
    %s482 = sld [smem:[#allocation7 + $0x28]]
    %v483 = vstv %s482
    %v484 = vmul.f32 %v483, %v180
    %v485 = vmul.f32 %v483, %v179
    %v486 = vadd.f32 %v480, %v484
    %v487 = vadd.f32 %v481, %v485
    %s488 = sld [smem:[#allocation7 + $0x29]]
    %v489 = vstv %s488
    %v490 = vmul.f32 %v489, %v186
    %v491 = vmul.f32 %v489, %v185
    %v492 = vadd.f32 %v486, %v490
    %v493 = vadd.f32 %v487, %v491
    %s494 = sld [smem:[#allocation7 + $0x2a]]
    %v495 = vstv %s494
    %v496 = vmul.f32 %v495, %v109
    %v497 = vmul.f32 %v495, %v110
    %v498 = vadd.f32 %v492, %v496
    %v499 = vadd.f32 %v493, %v497
    %s500 = sld [smem:[#allocation7 + $0x2b]]
    %v501 = vstv %s500
    %v502 = vmul.f32 %v501, %v54
    %504 = vst [vmem:[#allocation1] ss:$4 sm:$0xff] %v502
    %v505 = vld.sshfl [vmem:[#allocation1] sm:$0xff pattern:$0x73625140]
    %v506 = vld.sshfl [vmem:[#allocation1 + $0x8] sm:$0xff pattern:$0x73625140]
    %v509 = vadd.f32 %v498, %v505
    %v510 = vadd.f32 %v499, %v506
    %s511 = sld [smem:[#allocation7 + $0x2c]]
    %v512 = vstv %s511
    %v513 = vmul.f32 %v512, %v137
    %v514 = vmul.f32 %v512, %v138
    %v515 = vadd.f32 %v509, %v513
    %v516 = vadd.f32 %v510, %v514
    %v519 = vrot.slane %v516, 6
    %v520 = vsel %vm251, %v515, %v519
    %522 = vst [vmem:[#allocation9 + $0x10] sm:$0xf] %v520
    // Predicated region
    $region26: #{tpu_custom_call.1} parent=1 // pred_check
      _
    $region27: #{tpu_custom_call.1} parent=1 // pred_check_branch
      %524 = sbr.rel (0) target = $region29
    $region28: #{tpu_custom_call.1} parent=1 // pred_region
      %526 = vsyncadd [#allocation4], 0
      %s528 = sshll.u32 [#allocation9], 4
      %s529 = int_to_ptr.vmem [resolvable:$true] %s528
      %s530 = sshll.u32 %s3, 4
      %s531 = int_to_ptr.hbm [resolvable:$true] %s530
      %533 = dma.vmem_to_hbm [thread:$0]  %s529, 320, %s531, [#allocation4]
    $region29: #{tpu_custom_call.1} parent=1 // pred_fallthru
      _
    // Predicated region
    $region30: #{tpu_custom_call.1} parent=1 // pred_check
      _
    $region31: #{tpu_custom_call.1} parent=1 // pred_check_branch
      %535 = sbr.rel (0) target = $region33
    $region32: #{tpu_custom_call.1} parent=1 // pred_region
      %537 = dma.done [#allocation4], 320
    $region33: #{tpu_custom_call.1} parent=1 // pred_fallthru
      _
    %538 = vsyncpa [#allocation3], 1
    %539 = vsyncpa [#allocation4], 1
    %540 = vsyncpa [#allocation5], 1
    %541 = vsyncpa [#allocation6], 1

</llo_original>
